<compile_context>
chip_gen: v7x
topology: tpu7x:2x2x1
jax: 0.10.0
libtpu: 0.0.40
codegen_flags: <defaults>
</compile_context>

<pallas_src>
import numpy as np
import jax
import jax.numpy as jnp
from jax.experimental import pallas as pl
from jax.experimental.pallas import tpu as pltpu


# ----------------------------------------------------------------------------
# Pallas kernel: one batch tile per grid step, all weights VMEM-resident.
# ----------------------------------------------------------------------------
def cholesky_mm_kernel(q_ref, w0_ref, b0_ref, w1_ref, b1_ref, w2_ref, b2_ref,
                       wl_ref, bl_ref, wr_ref, br_ref, c_ref, m_ref):
    q = q_ref[...]                                                    # (TB, qdim)

    # --- ResMLP embed (tanh on the EUP; keep f32) ----------------------------
    h = jnp.tanh(jnp.dot(q, w0_ref[...],
                         preferred_element_type=jnp.float32) + b0_ref[...])
    h = jnp.tanh(jnp.dot(h, w1_ref[...],
                         preferred_element_type=jnp.float32) + b1_ref[...]) + h
    e = jnp.dot(h, w2_ref[...],
                preferred_element_type=jnp.float32) + b2_ref[...]     # (TB, H)

    # --- head + scatter + L@L^T, all folded into three MXU matmuls ----------
    # left[b, (i*q+j)*q+k]  = L[b, i, k]     (head weight pre-multiplied by the
    # right[b, (i*q+j)*q+k] = L[b, j, k]      scatter / expansion matrices)
    left = jnp.dot(e, wl_ref[...],
                   preferred_element_type=jnp.float32) + bl_ref[...]  # (TB, q^3)
    right = jnp.dot(e, wr_ref[...],
                    preferred_element_type=jnp.float32) + br_ref[...] # (TB, q^3)
    # M_flat[b, i*q+j] = sum_k L[b,i,k] * L[b,j,k]   (contraction on the MXU)
    m_ref[...] = jnp.dot(left * right, c_ref[...],
                         preferred_element_type=jnp.float32).astype(m_ref.dtype)


# ----------------------------------------------------------------------------
# Trace-time folding of the output head with the triangular scatter and the
# L @ L^T pair-selection.
# ----------------------------------------------------------------------------
def fold_head(wo, bo, qdim, bias):
    K = qdim * (qdim + 1) // 2
    q2 = qdim * qdim
    q3 = q2 * qdim

    # sel: (K, q2) one-hot scatter of L_params into flattened lower-tri L.
    sel = np.zeros((K, q2), np.float32)
    for i in range(qdim):                               # diag params -> (i, i)
        sel[i, i * qdim + i] = 1.0
    ii, jj = np.tril_indices(qdim, k=-1)                # strict lower, row-major
    for t, (i, j) in enumerate(zip(ii, jj)):
        sel[qdim + t, i * qdim + j] = 1.0

    bias_vec = np.zeros((1, K), np.float32)
    bias_vec[0, :qdim] = bias

    # Expansion / contraction matrices for M = L @ L^T as a single contraction.
    A = np.zeros((q2, q3), np.float32)
    Bm = np.zeros((q2, q3), np.float32)
    C = np.zeros((q3, q2), np.float32)
    for i in range(qdim):
        for j in range(qdim):
            for k in range(qdim):
                m = (i * qdim + j) * qdim + k
                A[i * qdim + k, m] = 1.0
                Bm[j * qdim + k, m] = 1.0
                C[m, i * qdim + j] = 1.0

    wo_sel = np.asarray(wo) @ sel                       # (H, q2)  exact: 0/1 sel
    b_sel = (np.asarray(bo) + bias_vec) @ sel           # (1, q2)
    W_left = jnp.asarray(wo_sel @ A)                    # (H, q3)
    b_left = jnp.asarray(b_sel @ A)                     # (1, q3)
    W_right = jnp.asarray(wo_sel @ Bm)                  # (H, q3)
    b_right = jnp.asarray(b_sel @ Bm)                   # (1, q3)
    return W_left, b_left, W_right, b_right, jnp.asarray(C)


# ----------------------------------------------------------------------------
# Wrapper: grid over batch, weights resident, (B, q*q) output reshaped outside.
# ----------------------------------------------------------------------------
def cholesky_mm_forward(q, params, bias=2.0, tb=1024):
    B, qdim = q.shape
    assert qdim > 1, "qdim == 1 path (_pos_enforce) not implemented"
    q2 = qdim * qdim
    w0, b0, w1, b1, w2, b2, wo, bo = params
    W_left, b_left, W_right, b_right, C = fold_head(wo, bo, qdim, bias)

    def _round_up(x, m):
        return (x + m - 1) // m * m

    TB = min(tb, _round_up(B, 8))                       # sublane-aligned tile
    Bp = _round_up(B, TB)
    qp = q if Bp == B else jnp.pad(q, ((0, Bp - B), (0, 0)))

    weights = (w0, b0, w1, b1, w2, b2, W_left, b_left, W_right, b_right, C)

    def const_spec(a):
        # full-array block, same block every grid step -> stays VMEM-resident
        return pl.BlockSpec(a.shape, lambda i: (0,) * a.ndim)

    m_flat = pl.pallas_call(
        cholesky_mm_kernel,
        out_shape=jax.ShapeDtypeStruct((Bp, q2), jnp.float32),
        grid=(Bp // TB,),
        in_specs=[pl.BlockSpec((TB, qdim), lambda i: (i, 0))]
                 + [const_spec(a) for a in weights],
        out_specs=pl.BlockSpec((TB, q2), lambda i: (i, 0)),
        compiler_params=pltpu.CompilerParams(
            dimension_semantics=("parallel",)),
    )(qp, *weights)

    return m_flat[:B].reshape(B, qdim, qdim)


# ----------------------------------------------------------------------------
# Parameter construction (deterministic)
# ----------------------------------------------------------------------------
def make_params(key, qdim, hidden_sizes):
    H = hidden_sizes[-1]
    K = qdim * (qdim + 1) // 2
    ks = jax.random.split(key, 8)

    def lin(kw, kb, fan_in, fan_out):
        lim = 1.0 / np.sqrt(fan_in)
        w = jax.random.uniform(kw, (fan_in, fan_out), jnp.float32, -lim, lim)
        b = jax.random.uniform(kb, (1, fan_out), jnp.float32, -lim, lim)
        return w, b

    w0, b0 = lin(ks[0], ks[1], qdim, hidden_sizes[0])
    w1, b1 = lin(ks[2], ks[3], hidden_sizes[0], hidden_sizes[1])
    w2, b2 = lin(ks[4], ks[5], hidden_sizes[1], H)
    wo, bo = lin(ks[6], ks[7], H, K)
    return (w0, b0, w1, b1, w2, b2, wo, bo)


# ----------------------------------------------------------------------------
# Pure-JAX reference (mirrors the PyTorch forward) for a sanity check
# ----------------------------------------------------------------------------
def reference_forward(q, params, qdim, bias):
    w0, b0, w1, b1, w2, b2, wo, bo = params
    h = jnp.tanh(q @ w0 + b0)
    h = jnp.tanh(h @ w1 + b1) + h
    e = h @ w2 + b2
    p = e @ wo + bo
    L_diag = p[:, :qdim] + bias
    L_tril = p[:, qdim:]
    B = q.shape[0]
    L = jnp.zeros((B, qdim, qdim), jnp.float32)
    ii, jj = np.tril_indices(qdim, k=-1)
    L = L.at[:, ii, jj].set(L_tril)
    di = np.arange(qdim)
    L = L.at[:, di, di].set(L_diag)
    return L @ jnp.swapaxes(L, -2, -1)


# ----------------------------------------------------------------------------
if __name__ == "__main__":
    B = 2
    qdim = 4
    hidden_sizes = [32, 32, 32]
    bias = 2.0

    key = jax.random.PRNGKey(0)
    kq, kp = jax.random.split(key)
    q = jax.random.normal(kq, (B, qdim), dtype=jnp.float32)

    params = make_params(kp, qdim, hidden_sizes)

    M = cholesky_mm_forward(q, params, bias=bias)
    M = jax.block_until_ready(M)

    M_ref = reference_forward(q, params, qdim, bias)
    assert M.shape == (B, qdim, qdim)
    np.testing.assert_allclose(np.asarray(M), np.asarray(M_ref),
                               rtol=1e-5, atol=1e-5)

    print("KERNEL_OK")
</pallas_src>

<mosaic_0001>
module attributes {stable_mosaic.version = 11 : i64} {
  func.func @cholesky_mm_kernel(%arg0: i32, %arg1: memref<8x4xf32, #tpu.memory_space<vmem>>, %arg2: memref<4x32xf32, #tpu.memory_space<vmem>>, %arg3: memref<1x32xf32, #tpu.memory_space<vmem>>, %arg4: memref<32x32xf32, #tpu.memory_space<vmem>>, %arg5: memref<1x32xf32, #tpu.memory_space<vmem>>, %arg6: memref<32x32xf32, #tpu.memory_space<vmem>>, %arg7: memref<1x32xf32, #tpu.memory_space<vmem>>, %arg8: memref<32x64xf32, #tpu.memory_space<vmem>>, %arg9: memref<1x64xf32, #tpu.memory_space<vmem>>, %arg10: memref<32x64xf32, #tpu.memory_space<vmem>>, %arg11: memref<1x64xf32, #tpu.memory_space<vmem>>, %arg12: memref<64x16xf32, #tpu.memory_space<vmem>>, %arg13: memref<8x16xf32, #tpu.memory_space<vmem>>) attributes {dimension_semantics = [#tpu.dimension_semantics<parallel>], iteration_bounds = array<i64: 1>, scalar_prefetch = 0 : i64, scratch_operands = 0 : i64, tpu.core_type = #tpu.core_type<tc>, window_params = [{transform_indices = @transform_0, window_bounds = array<i64: 8, 4>}, {pipeline_mode = #tpu.pipeline_mode<synchronous>, transform_indices = @transform_1, window_bounds = array<i64: 4, 32>}, {pipeline_mode = #tpu.pipeline_mode<synchronous>, transform_indices = @transform_2, window_bounds = array<i64: 1, 32>}, {pipeline_mode = #tpu.pipeline_mode<synchronous>, transform_indices = @transform_3, window_bounds = array<i64: 32, 32>}, {pipeline_mode = #tpu.pipeline_mode<synchronous>, transform_indices = @transform_4, window_bounds = array<i64: 1, 32>}, {pipeline_mode = #tpu.pipeline_mode<synchronous>, transform_indices = @transform_5, window_bounds = array<i64: 32, 32>}, {pipeline_mode = #tpu.pipeline_mode<synchronous>, transform_indices = @transform_6, window_bounds = array<i64: 1, 32>}, {pipeline_mode = #tpu.pipeline_mode<synchronous>, transform_indices = @transform_7, window_bounds = array<i64: 32, 64>}, {pipeline_mode = #tpu.pipeline_mode<synchronous>, transform_indices = @transform_8, window_bounds = array<i64: 1, 64>}, {pipeline_mode = #tpu.pipeline_mode<synchronous>, transform_indices = @transform_9, window_bounds = array<i64: 32, 64>}, {pipeline_mode = #tpu.pipeline_mode<synchronous>, transform_indices = @transform_10, window_bounds = array<i64: 1, 64>}, {pipeline_mode = #tpu.pipeline_mode<synchronous>, transform_indices = @transform_11, window_bounds = array<i64: 64, 16>}, {transform_indices = @transform_12, window_bounds = array<i64: 8, 16>}]} {
    %c0 = arith.constant 0 : index
    %c0_0 = arith.constant 0 : index
    %0 = vector.load %arg1[%c0, %c0_0] : memref<8x4xf32, #tpu.memory_space<vmem>>, vector<8x4xf32>
    %c0_1 = arith.constant 0 : index
    %c0_2 = arith.constant 0 : index
    %1 = vector.load %arg2[%c0_1, %c0_2] : memref<4x32xf32, #tpu.memory_space<vmem>>, vector<4x32xf32>
    %cst = arith.constant dense<0.000000e+00> : vector<8x32xf32>
    %2 = tpu.matmul %0, %1, %cst {dimension_numbers = #tpu.dot_dimension_numbers<[1], [0], [0], [1], [0, 0, 1, 1], [], []>} : vector<8x4xf32>, vector<4x32xf32>, vector<8x32xf32> -> vector<8x32xf32>
    %c0_3 = arith.constant 0 : index
    %c0_4 = arith.constant 0 : index
    %3 = vector.load %arg3[%c0_3, %c0_4] : memref<1x32xf32, #tpu.memory_space<vmem>>, vector<1x32xf32>
    %4 = vector.broadcast %3 : vector<1x32xf32> to vector<8x32xf32>
    %5 = arith.addf %2, %4 : vector<8x32xf32>
    %6 = math.tanh %5 : vector<8x32xf32>
    %c0_5 = arith.constant 0 : index
    %c0_6 = arith.constant 0 : index
    %7 = vector.load %arg4[%c0_5, %c0_6] : memref<32x32xf32, #tpu.memory_space<vmem>>, vector<32x32xf32>
    %cst_7 = arith.constant dense<0.000000e+00> : vector<8x32xf32>
    %8 = tpu.matmul %6, %7, %cst_7 {dimension_numbers = #tpu.dot_dimension_numbers<[1], [0], [0], [1], [0, 0, 1, 1], [], []>} : vector<8x32xf32>, vector<32x32xf32>, vector<8x32xf32> -> vector<8x32xf32>
    %c0_8 = arith.constant 0 : index
    %c0_9 = arith.constant 0 : index
    %9 = vector.load %arg5[%c0_8, %c0_9] : memref<1x32xf32, #tpu.memory_space<vmem>>, vector<1x32xf32>
    %10 = vector.broadcast %9 : vector<1x32xf32> to vector<8x32xf32>
    %11 = arith.addf %8, %10 : vector<8x32xf32>
    %12 = math.tanh %11 : vector<8x32xf32>
    %13 = arith.addf %12, %6 : vector<8x32xf32>
    %c0_10 = arith.constant 0 : index
    %c0_11 = arith.constant 0 : index
    %14 = vector.load %arg6[%c0_10, %c0_11] : memref<32x32xf32, #tpu.memory_space<vmem>>, vector<32x32xf32>
    %cst_12 = arith.constant dense<0.000000e+00> : vector<8x32xf32>
    %15 = tpu.matmul %13, %14, %cst_12 {dimension_numbers = #tpu.dot_dimension_numbers<[1], [0], [0], [1], [0, 0, 1, 1], [], []>} : vector<8x32xf32>, vector<32x32xf32>, vector<8x32xf32> -> vector<8x32xf32>
    %c0_13 = arith.constant 0 : index
    %c0_14 = arith.constant 0 : index
    %16 = vector.load %arg7[%c0_13, %c0_14] : memref<1x32xf32, #tpu.memory_space<vmem>>, vector<1x32xf32>
    %17 = vector.broadcast %16 : vector<1x32xf32> to vector<8x32xf32>
    %18 = arith.addf %15, %17 : vector<8x32xf32>
    %c0_15 = arith.constant 0 : index
    %c0_16 = arith.constant 0 : index
    %19 = vector.load %arg8[%c0_15, %c0_16] : memref<32x64xf32, #tpu.memory_space<vmem>>, vector<32x64xf32>
    %cst_17 = arith.constant dense<0.000000e+00> : vector<8x64xf32>
    %20 = tpu.matmul %18, %19, %cst_17 {dimension_numbers = #tpu.dot_dimension_numbers<[1], [0], [0], [1], [0, 0, 1, 1], [], []>} : vector<8x32xf32>, vector<32x64xf32>, vector<8x64xf32> -> vector<8x64xf32>
    %c0_18 = arith.constant 0 : index
    %c0_19 = arith.constant 0 : index
    %21 = vector.load %arg9[%c0_18, %c0_19] : memref<1x64xf32, #tpu.memory_space<vmem>>, vector<1x64xf32>
    %22 = vector.broadcast %21 : vector<1x64xf32> to vector<8x64xf32>
    %23 = arith.addf %20, %22 : vector<8x64xf32>
    %c0_20 = arith.constant 0 : index
    %c0_21 = arith.constant 0 : index
    %24 = vector.load %arg10[%c0_20, %c0_21] : memref<32x64xf32, #tpu.memory_space<vmem>>, vector<32x64xf32>
    %cst_22 = arith.constant dense<0.000000e+00> : vector<8x64xf32>
    %25 = tpu.matmul %18, %24, %cst_22 {dimension_numbers = #tpu.dot_dimension_numbers<[1], [0], [0], [1], [0, 0, 1, 1], [], []>} : vector<8x32xf32>, vector<32x64xf32>, vector<8x64xf32> -> vector<8x64xf32>
    %c0_23 = arith.constant 0 : index
    %c0_24 = arith.constant 0 : index
    %26 = vector.load %arg11[%c0_23, %c0_24] : memref<1x64xf32, #tpu.memory_space<vmem>>, vector<1x64xf32>
    %27 = vector.broadcast %26 : vector<1x64xf32> to vector<8x64xf32>
    %28 = arith.addf %25, %27 : vector<8x64xf32>
    %29 = arith.mulf %23, %28 : vector<8x64xf32>
    %c0_25 = arith.constant 0 : index
    %c0_26 = arith.constant 0 : index
    %30 = vector.load %arg12[%c0_25, %c0_26] : memref<64x16xf32, #tpu.memory_space<vmem>>, vector<64x16xf32>
    %cst_27 = arith.constant dense<0.000000e+00> : vector<8x16xf32>
    %31 = tpu.matmul %29, %30, %cst_27 {dimension_numbers = #tpu.dot_dimension_numbers<[1], [0], [0], [1], [0, 0, 1, 1], [], []>} : vector<8x64xf32>, vector<64x16xf32>, vector<8x16xf32> -> vector<8x16xf32>
    %c0_28 = arith.constant 0 : index
    %c0_29 = arith.constant 0 : index
    %32 = vector.load %arg13[%c0_28, %c0_29] : memref<8x16xf32, #tpu.memory_space<vmem>>, vector<8x16xf32>
    tpu.vector_store %arg13[%c0_28, %c0_29], %31 {strides = array<i32>} : memref<8x16xf32, #tpu.memory_space<vmem>>, vector<8x16xf32>,
    return
  }
  func.func @transform_0(%arg0: i32) -> (i32, i32) {
    %c0_i32 = arith.constant 0 : i32
    %c0_i32_0 = arith.constant 0 : i32
    return %arg0, %c0_i32 : i32, i32
  }
  func.func @transform_1(%arg0: i32) -> (i32, i32) {
    %c0_i32 = arith.constant 0 : i32
    %c0_i32_0 = arith.constant 0 : i32
    %c0_i32_1 = arith.constant 0 : i32
    return %c0_i32, %c0_i32_0 : i32, i32
  }
  func.func @transform_2(%arg0: i32) -> (i32, i32) {
    %c0_i32 = arith.constant 0 : i32
    %c0_i32_0 = arith.constant 0 : i32
    %c0_i32_1 = arith.constant 0 : i32
    return %c0_i32, %c0_i32_0 : i32, i32
  }
  func.func @transform_3(%arg0: i32) -> (i32, i32) {
    %c0_i32 = arith.constant 0 : i32
    %c0_i32_0 = arith.constant 0 : i32
    %c0_i32_1 = arith.constant 0 : i32
    return %c0_i32, %c0_i32_0 : i32, i32
  }
  func.func @transform_4(%arg0: i32) -> (i32, i32) {
    %c0_i32 = arith.constant 0 : i32
    %c0_i32_0 = arith.constant 0 : i32
    %c0_i32_1 = arith.constant 0 : i32
    return %c0_i32, %c0_i32_0 : i32, i32
  }
  func.func @transform_5(%arg0: i32) -> (i32, i32) {
    %c0_i32 = arith.constant 0 : i32
    %c0_i32_0 = arith.constant 0 : i32
    %c0_i32_1 = arith.constant 0 : i32
    return %c0_i32, %c0_i32_0 : i32, i32
  }
  func.func @transform_6(%arg0: i32) -> (i32, i32) {
    %c0_i32 = arith.constant 0 : i32
    %c0_i32_0 = arith.constant 0 : i32
    %c0_i32_1 = arith.constant 0 : i32
    return %c0_i32, %c0_i32_0 : i32, i32
  }
  func.func @transform_7(%arg0: i32) -> (i32, i32) {
    %c0_i32 = arith.constant 0 : i32
    %c0_i32_0 = arith.constant 0 : i32
    %c0_i32_1 = arith.constant 0 : i32
    return %c0_i32, %c0_i32_0 : i32, i32
  }
  func.func @transform_8(%arg0: i32) -> (i32, i32) {
    %c0_i32 = arith.constant 0 : i32
    %c0_i32_0 = arith.constant 0 : i32
    %c0_i32_1 = arith.constant 0 : i32
    return %c0_i32, %c0_i32_0 : i32, i32
  }
  func.func @transform_9(%arg0: i32) -> (i32, i32) {
    %c0_i32 = arith.constant 0 : i32
    %c0_i32_0 = arith.constant 0 : i32
    %c0_i32_1 = arith.constant 0 : i32
    return %c0_i32, %c0_i32_0 : i32, i32
  }
  func.func @transform_10(%arg0: i32) -> (i32, i32) {
    %c0_i32 = arith.constant 0 : i32
    %c0_i32_0 = arith.constant 0 : i32
    %c0_i32_1 = arith.constant 0 : i32
    return %c0_i32, %c0_i32_0 : i32, i32
  }
  func.func @transform_11(%arg0: i32) -> (i32, i32) {
    %c0_i32 = arith.constant 0 : i32
    %c0_i32_0 = arith.constant 0 : i32
    %c0_i32_1 = arith.constant 0 : i32
    return %c0_i32, %c0_i32_0 : i32, i32
  }
  func.func @transform_12(%arg0: i32) -> (i32, i32) {
    %c0_i32 = arith.constant 0 : i32
    %c0_i32_0 = arith.constant 0 : i32
    return %arg0, %c0_i32 : i32, i32
  }
}

</mosaic_0001>

<llo_original>
// kernel: tpu_custom_call.1
$region0: #{tpu_custom_call.1}
  #allocation0 [shape = 'u32[]', space=smem, size = 0x4, offset = 0x4, fixed_abs, tag = 'smem constant byte address 0x4 - core index']
  #allocation1 [shape = 'u32[144,128]{1,0:T(1,128)}', space=vmem, size = 0x12000, scoped, tag = 'internal scratch']
  %s0 = inlined_call_operand.vmem [shape: f32[8,4], index: 0, kind: input, shape index: {}]
  %s1 = inlined_call_operand.hbm [shape: f32[4,32], index: 1, kind: input, shape index: {}]
  %s2 = inlined_call_operand.vmem [shape: f32[1,32], index: 2, kind: input, shape index: {}]
  %s3 = inlined_call_operand.vmem [shape: f32[32,32], index: 3, kind: input, shape index: {}]
  %s4 = inlined_call_operand.vmem [shape: f32[1,32], index: 4, kind: input, shape index: {}]
  %s5 = inlined_call_operand.vmem [shape: f32[32,32], index: 5, kind: input, shape index: {}]
  %s6 = inlined_call_operand.hbm [shape: f32[1,32], index: 6, kind: input, shape index: {}]
  %s7 = inlined_call_operand.vmem [shape: f32[32,64], index: 7, kind: input, shape index: {}]
  %s8 = inlined_call_operand.vmem [shape: f32[1,64], index: 8, kind: input, shape index: {}]
  %s9 = inlined_call_operand.hbm [shape: f32[32,64], index: 9, kind: input, shape index: {}]
  %s10 = inlined_call_operand.vmem [shape: f32[1,64], index: 10, kind: input, shape index: {}]
  %s11 = inlined_call_operand.vmem [shape: f32[64,16], index: 11, kind: input, shape index: {}]
  %s12 = inlined_call_operand.hbm [shape: f32[8,16], index: 12, kind: output, shape index: {}]
  %s13 = sld [smem:[#allocation0]]
  $region70: #{tpu_custom_call.1} parent=0
    _
  %s15 = ssub.s32 1, %s13
  %s16 = scalar_select 0, %s15, %s13
  $region1: #{tpu_custom_call.1} parent=0
    #allocation2 [shape = 'u8[2048]{0}', space=vmem, size = 0x800, scoped, tag = 'input window, operand 1, single buffered']
    #allocation3 [shape = 's32[1]{0}', space=sflag, size = 0x4, scoped, tag = 'scoped memory for tpu_custom_call.1']
    #allocation4 [shape = 's32[1]{0}', space=sflag, size = 0x4, scoped, tag = 'scoped memory for tpu_custom_call.1']
    #allocation5 [shape = 'u8[512]{0}', space=vmem, size = 0x400, scoped, tag = 'input window, operand 6, single buffered']
    #allocation6 [shape = 's32[1]{0}', space=sflag, size = 0x4, scoped, tag = 'scoped memory for tpu_custom_call.1']
    #allocation7 [shape = 'u8[16384]{0}', space=vmem, size = 0x4000, scoped, tag = 'input window, operand 9, single buffered']
    #allocation8 [shape = 'u8[4096]{0}', space=vmem, size = 0x1000, scoped, tag = 'output window, operand 0, single buffered']
    %17 = vsyncpa [#allocation3], 0
    %18 = vsyncpa [#allocation6], 0
    %19 = vsyncpa [#allocation4], 0
    // Predicated region
    $region2: #{tpu_custom_call.1} parent=1 // pred_check
      _
    $region3: #{tpu_custom_call.1} parent=1 // pred_check_branch
      %21 = sbr.rel (0) target = $region5
    $region4: #{tpu_custom_call.1} parent=1 // pred_region
      _
    $region5: #{tpu_custom_call.1} parent=1 // pred_fallthru
      _
    // Predicated region
    $region6: #{tpu_custom_call.1} parent=1 // pred_check
      _
    $region7: #{tpu_custom_call.1} parent=1 // pred_check_branch
      %23 = sbr.rel (0) target = $region9
    $region8: #{tpu_custom_call.1} parent=1 // pred_region
      %s25 = ssub.s32 64, 64
      %26 = vsyncadd [#allocation3], %s25
      %s28 = sshll.u32 [#allocation2], 4
      %s29 = int_to_ptr.vmem [resolvable:$true] %s28
      %31 = dma.hbm_to_vmem [thread:$0]  %s1, 64, %s29, [#allocation3]
    $region9: #{tpu_custom_call.1} parent=1 // pred_fallthru
      _
    // Predicated region
    $region10: #{tpu_custom_call.1} parent=1 // pred_check
      _
    $region11: #{tpu_custom_call.1} parent=1 // pred_check_branch
      %33 = sbr.rel (0) target = $region13
    $region12: #{tpu_custom_call.1} parent=1 // pred_region
      _
    $region13: #{tpu_custom_call.1} parent=1 // pred_fallthru
      _
    // Predicated region
    $region14: #{tpu_custom_call.1} parent=1 // pred_check
      _
    $region15: #{tpu_custom_call.1} parent=1 // pred_check_branch
      %35 = sbr.rel (0) target = $region17
    $region16: #{tpu_custom_call.1} parent=1 // pred_region
      _
    $region17: #{tpu_custom_call.1} parent=1 // pred_fallthru
      _
    // Predicated region
    $region18: #{tpu_custom_call.1} parent=1 // pred_check
      _
    $region19: #{tpu_custom_call.1} parent=1 // pred_check_branch
      %37 = sbr.rel (0) target = $region21
    $region20: #{tpu_custom_call.1} parent=1 // pred_region
      _
    $region21: #{tpu_custom_call.1} parent=1 // pred_fallthru
      _
    // Predicated region
    $region22: #{tpu_custom_call.1} parent=1 // pred_check
      _
    $region23: #{tpu_custom_call.1} parent=1 // pred_check_branch
      %39 = sbr.rel (0) target = $region25
    $region24: #{tpu_custom_call.1} parent=1 // pred_region
      _
    $region25: #{tpu_custom_call.1} parent=1 // pred_fallthru
      _
    // Predicated region
    $region26: #{tpu_custom_call.1} parent=1 // pred_check
      _
    $region27: #{tpu_custom_call.1} parent=1 // pred_check_branch
      %41 = sbr.rel (0) target = $region29
    $region28: #{tpu_custom_call.1} parent=1 // pred_region
      %s43 = ssub.s32 16, 16
      %44 = vsyncadd [#allocation6], %s43
      %s46 = sshll.u32 [#allocation5], 4
      %s47 = int_to_ptr.vmem [resolvable:$true] %s46
      %49 = dma.hbm_to_vmem [thread:$0]  %s6, 16, %s47, [#allocation6]
    $region29: #{tpu_custom_call.1} parent=1 // pred_fallthru
      _
    // Predicated region
    $region30: #{tpu_custom_call.1} parent=1 // pred_check
      _
    $region31: #{tpu_custom_call.1} parent=1 // pred_check_branch
      %51 = sbr.rel (0) target = $region33
    $region32: #{tpu_custom_call.1} parent=1 // pred_region
      _
    $region33: #{tpu_custom_call.1} parent=1 // pred_fallthru
      _
    // Predicated region
    $region34: #{tpu_custom_call.1} parent=1 // pred_check
      _
    $region35: #{tpu_custom_call.1} parent=1 // pred_check_branch
      %53 = sbr.rel (0) target = $region37
    $region36: #{tpu_custom_call.1} parent=1 // pred_region
      _
    $region37: #{tpu_custom_call.1} parent=1 // pred_fallthru
      _
    // Predicated region
    $region38: #{tpu_custom_call.1} parent=1 // pred_check
      _
    $region39: #{tpu_custom_call.1} parent=1 // pred_check_branch
      %55 = sbr.rel (0) target = $region41
    $region40: #{tpu_custom_call.1} parent=1 // pred_region
      %s57 = ssub.s32 512, 512
      %58 = vsyncadd [#allocation6], %s57
      %s59 = sshll.u32 [#allocation7], 4
      %s60 = int_to_ptr.vmem [resolvable:$true] %s59
      %65 = dma.hbm_to_vmem [thread:$0]  %s9, 512, %s60, [#allocation6], 128, 128, 8
    $region41: #{tpu_custom_call.1} parent=1 // pred_fallthru
      _
    // Predicated region
    $region42: #{tpu_custom_call.1} parent=1 // pred_check
      _
    $region43: #{tpu_custom_call.1} parent=1 // pred_check_branch
      %67 = sbr.rel (0) target = $region45
    $region44: #{tpu_custom_call.1} parent=1 // pred_region
      _
    $region45: #{tpu_custom_call.1} parent=1 // pred_fallthru
      _
    // Predicated region
    $region46: #{tpu_custom_call.1} parent=1 // pred_check
      _
    $region47: #{tpu_custom_call.1} parent=1 // pred_check_branch
      %69 = sbr.rel (0) target = $region49
    $region48: #{tpu_custom_call.1} parent=1 // pred_region
      _
    $region49: #{tpu_custom_call.1} parent=1 // pred_fallthru
      _
    // Predicated region
    $region50: #{tpu_custom_call.1} parent=1 // pred_check
      _
    $region51: #{tpu_custom_call.1} parent=1 // pred_check_branch
      %71 = sbr.rel (0) target = $region53
    $region52: #{tpu_custom_call.1} parent=1 // pred_region
      %72 = dma.done [#allocation3], 64
    $region53: #{tpu_custom_call.1} parent=1 // pred_fallthru
      _
    // Predicated region
    $region54: #{tpu_custom_call.1} parent=1 // pred_check
      _
    $region55: #{tpu_custom_call.1} parent=1 // pred_check_branch
      %74 = sbr.rel (0) target = $region57
    $region56: #{tpu_custom_call.1} parent=1 // pred_region
      %75 = dma.done [#allocation6], 16
    $region57: #{tpu_custom_call.1} parent=1 // pred_fallthru
      _
    // Predicated region
    $region58: #{tpu_custom_call.1} parent=1 // pred_check
      _
    $region59: #{tpu_custom_call.1} parent=1 // pred_check_branch
      %77 = sbr.rel (0) target = $region61
    $region60: #{tpu_custom_call.1} parent=1 // pred_region
      %78 = dma.done [#allocation6], 512
    $region61: #{tpu_custom_call.1} parent=1 // pred_fallthru
      _
    %v79 = vld [vmem:[%s0] sm:$0xff]
    %v80 = vld [vmem:[#allocation2] sm:$0xf]
    %v81 = vld [vmem:[%s2] sm:$0x1]
    %v83 = vlaneseq
    %v84 = vshrl.u32 %v83, 7
    %v85 = vsub.s32 0, %v84
    %v86 = vrot.slane %v81, %v85
    %vm88 = vcmask 31744
    %v90 = vsel %vm88, %v79, 0
    %vm92 = vcmask 1043456
    %v94 = vsel %vm92, %v80, 0
    %96 = vmatprep.subr.mxu0 0.0
    %97 = vmatpush1.msra.mxu0 %v94
    %98 = vmatprep.subr.mxu0 0.0
    %99 = vmatpush1.msra.mxu0 0.0
    %100 = vmatprep.subr.mxu0 0.0
    %101 = vmatpush1.msra.mxu0 0.0
    %102 = vmatprep.subr.mxu0 0.0
    %103 = vmatpush1.msra.mxu0 0.0
    %104 = vmatprep.subr.mxu0 0.0
    %105 = vmatpush1.msra.mxu0 0.0
    %106 = vmatprep.subr.mxu0 0.0
    %107 = vmatpush1.msra.mxu0 0.0
    %108 = vmatprep.subr.mxu0 0.0
    %109 = vmatpush1.msra.mxu0 0.0
    %110 = vmatprep.subr.mxu0 0.0
    %111 = vmatpush1.msra.mxu0 0.0
    %112 = vmatprep.subr.mxu0 0.0
    %113 = vmatpush1.msra.mxu0 0.0
    %114 = vmatprep.subr.mxu0 0.0
    %115 = vmatpush1.msra.mxu0 0.0
    %116 = vmatprep.subr.mxu0 0.0
    %117 = vmatpush1.msra.mxu0 0.0
    %118 = vmatprep.subr.mxu0 0.0
    %119 = vmatpush1.msra.mxu0 0.0
    %120 = vmatprep.subr.mxu0 0.0
    %121 = vmatpush1.msra.mxu0 0.0
    %122 = vmatprep.subr.mxu0 0.0
    %123 = vmatpush1.msra.mxu0 0.0
    %124 = vmatprep.subr.mxu0 0.0
    %125 = vmatpush1.msra.mxu0 0.0
    %126 = vmatprep.subr.mxu0 0.0
    %127 = vmatpush1.msra.mxu0 0.0
    %128 = vmatprep.subr.mxu0 0.0
    %129 = vmatpush1.msra.mxu0 0.0
    %130 = vmatprep.subr.mxu0 0.0
    %131 = vmatpush1.msra.mxu0 0.0
    %132 = vmatprep.subr.mxu0 0.0
    %133 = vmatpush1.msra.mxu0 0.0
    %134 = vmatprep.subr.mxu0 0.0
    %135 = vmatpush1.msra.mxu0 0.0
    %136 = vmatprep.subr.mxu0 0.0
    %137 = vmatpush1.msra.mxu0 0.0
    %138 = vmatprep.subr.mxu0 0.0
    %139 = vmatpush1.msra.mxu0 0.0
    %140 = vmatprep.subr.mxu0 0.0
    %141 = vmatpush1.msra.mxu0 0.0
    %142 = vmatprep.subr.mxu0 0.0
    %143 = vmatpush1.msra.mxu0 0.0
    %144 = vmatprep.subr.mxu0 0.0
    %145 = vmatpush1.msra.mxu0 0.0
    %146 = vmatprep.subr.mxu0 0.0
    %147 = vmatpush1.msra.mxu0 0.0
    %148 = vmatprep.subr.mxu0 0.0
    %149 = vmatpush1.msra.mxu0 0.0
    %150 = vmatprep.subr.mxu0 0.0
    %151 = vmatpush1.msra.mxu0 0.0
    %152 = vmatprep.subr.mxu0 0.0
    %153 = vmatpush1.msra.mxu0 0.0
    %154 = vmatprep.subr.mxu0 0.0
    %155 = vmatpush1.msra.mxu0 0.0
    %156 = vmatprep.subr.mxu0 0.0
    %157 = vmatpush1.msra.mxu0 0.0
    %158 = vmatprep.subr.mxu0 0.0
    %159 = vmatpush1.msra.mxu0 0.0
    %160 = vmatprep.mubr.f32.mxu0 0.0
    %161 = vmatmul.mubr.f32.gmra.mrb[0].mxu0 %v90
    %v162 = vpop.f32.mrb[0].mxu0
    %v163 = vadd.f32 %v86, %v162
    %v164 = vpop.f32.mrb[0].mxu0
    %165 = vdwg.mxu0
    %v166 = vtanh.pop %v163
    %v167 = vld [vmem:[%s3] sm:$0xff]
    %v168 = vld [vmem:[%s3 + $0x8] sm:$0xff]
    %v169 = vld [vmem:[%s3 + $0x10] sm:$0xff]
    %v170 = vld [vmem:[%s3 + $0x18] sm:$0xff]
    %v171 = vld [vmem:[%s4] sm:$0x1]
    %v173 = vlaneseq
    %v174 = vshrl.u32 %v173, 7
    %v175 = vsub.s32 0, %v174
    %v176 = vrot.slane %v171, %v175
    %vm178 = vcmask 261120
    %v180 = vsel %vm178, %v166, 0
    %182 = vmatprep.subr.mxu0 0.0
    %183 = vmatpush1.msra.mxu0 %v167
    %184 = vmatprep.subr.mxu0 0.0
    %185 = vmatpush1.msra.mxu0 %v168
    %186 = vmatprep.subr.mxu0 0.0
    %187 = vmatpush1.msra.mxu0 %v169
    %188 = vmatprep.subr.mxu0 0.0
    %189 = vmatpush1.msra.mxu0 %v170
    %190 = vmatprep.subr.mxu0 0.0
    %191 = vmatpush1.msra.mxu0 0.0
    %192 = vmatprep.subr.mxu0 0.0
    %193 = vmatpush1.msra.mxu0 0.0
    %194 = vmatprep.subr.mxu0 0.0
    %195 = vmatpush1.msra.mxu0 0.0
    %196 = vmatprep.subr.mxu0 0.0
    %197 = vmatpush1.msra.mxu0 0.0
    %198 = vmatprep.subr.mxu0 0.0
    %199 = vmatpush1.msra.mxu0 0.0
    %200 = vmatprep.subr.mxu0 0.0
    %201 = vmatpush1.msra.mxu0 0.0
    %202 = vmatprep.subr.mxu0 0.0
    %203 = vmatpush1.msra.mxu0 0.0
    %204 = vmatprep.subr.mxu0 0.0
    %205 = vmatpush1.msra.mxu0 0.0
    %206 = vmatprep.subr.mxu0 0.0
    %207 = vmatpush1.msra.mxu0 0.0
    %208 = vmatprep.subr.mxu0 0.0
    %209 = vmatpush1.msra.mxu0 0.0
    %210 = vmatprep.subr.mxu0 0.0
    %211 = vmatpush1.msra.mxu0 0.0
    %212 = vmatprep.subr.mxu0 0.0
    %213 = vmatpush1.msra.mxu0 0.0
    %214 = vmatprep.subr.mxu0 0.0
    %215 = vmatpush1.msra.mxu0 0.0
    %216 = vmatprep.subr.mxu0 0.0
    %217 = vmatpush1.msra.mxu0 0.0
    %218 = vmatprep.subr.mxu0 0.0
    %219 = vmatpush1.msra.mxu0 0.0
    %220 = vmatprep.subr.mxu0 0.0
    %221 = vmatpush1.msra.mxu0 0.0
    %222 = vmatprep.subr.mxu0 0.0
    %223 = vmatpush1.msra.mxu0 0.0
    %224 = vmatprep.subr.mxu0 0.0
    %225 = vmatpush1.msra.mxu0 0.0
    %226 = vmatprep.subr.mxu0 0.0
    %227 = vmatpush1.msra.mxu0 0.0
    %228 = vmatprep.subr.mxu0 0.0
    %229 = vmatpush1.msra.mxu0 0.0
    %230 = vmatprep.subr.mxu0 0.0
    %231 = vmatpush1.msra.mxu0 0.0
    %232 = vmatprep.subr.mxu0 0.0
    %233 = vmatpush1.msra.mxu0 0.0
    %234 = vmatprep.subr.mxu0 0.0
    %235 = vmatpush1.msra.mxu0 0.0
    %236 = vmatprep.subr.mxu0 0.0
    %237 = vmatpush1.msra.mxu0 0.0
    %238 = vmatprep.subr.mxu0 0.0
    %239 = vmatpush1.msra.mxu0 0.0
    %240 = vmatprep.subr.mxu0 0.0
    %241 = vmatpush1.msra.mxu0 0.0
    %242 = vmatprep.subr.mxu0 0.0
    %243 = vmatpush1.msra.mxu0 0.0
    %244 = vmatprep.subr.mxu0 0.0
    %245 = vmatpush1.msra.mxu0 0.0
    %246 = vmatprep.mubr.f32.mxu0 0.0
    %247 = vmatmul.mubr.f32.gmra.mrb[0].mxu0 %v180
    %v248 = vpop.f32.mrb[0].mxu0
    %v249 = vadd.f32 %v176, %v248
    %v250 = vpop.f32.mrb[0].mxu0
    %251 = vdwg.mxu0
    %v252 = vtanh.pop %v249
    %v253 = vadd.f32 %v252, %v166
    %v254 = vld [vmem:[%s5] sm:$0xff]
    %v255 = vld [vmem:[%s5 + $0x8] sm:$0xff]
    %v256 = vld [vmem:[%s5 + $0x10] sm:$0xff]
    %v257 = vld [vmem:[%s5 + $0x18] sm:$0xff]
    %v258 = vld [vmem:[#allocation5] sm:$0x1]
    %v260 = vlaneseq
    %v261 = vshrl.u32 %v260, 7
    %v262 = vsub.s32 0, %v261
    %v263 = vrot.slane %v258, %v262
    %v266 = vsel %vm178, %v253, 0
    %268 = vmatprep.subr.mxu0 0.0
    %269 = vmatpush1.msra.mxu0 %v254
    %270 = vmatprep.subr.mxu0 0.0
    %271 = vmatpush1.msra.mxu0 %v255
    %272 = vmatprep.subr.mxu0 0.0
    %273 = vmatpush1.msra.mxu0 %v256
    %274 = vmatprep.subr.mxu0 0.0
    %275 = vmatpush1.msra.mxu0 %v257
    %276 = vmatprep.subr.mxu0 0.0
    %277 = vmatpush1.msra.mxu0 0.0
    %278 = vmatprep.subr.mxu0 0.0
    %279 = vmatpush1.msra.mxu0 0.0
    %280 = vmatprep.subr.mxu0 0.0
    %281 = vmatpush1.msra.mxu0 0.0
    %282 = vmatprep.subr.mxu0 0.0
    %283 = vmatpush1.msra.mxu0 0.0
    %284 = vmatprep.subr.mxu0 0.0
    %285 = vmatpush1.msra.mxu0 0.0
    %286 = vmatprep.subr.mxu0 0.0
    %287 = vmatpush1.msra.mxu0 0.0
    %288 = vmatprep.subr.mxu0 0.0
    %289 = vmatpush1.msra.mxu0 0.0
    %290 = vmatprep.subr.mxu0 0.0
    %291 = vmatpush1.msra.mxu0 0.0
    %292 = vmatprep.subr.mxu0 0.0
    %293 = vmatpush1.msra.mxu0 0.0
    %294 = vmatprep.subr.mxu0 0.0
    %295 = vmatpush1.msra.mxu0 0.0
    %296 = vmatprep.subr.mxu0 0.0
    %297 = vmatpush1.msra.mxu0 0.0
    %298 = vmatprep.subr.mxu0 0.0
    %299 = vmatpush1.msra.mxu0 0.0
    %300 = vmatprep.subr.mxu0 0.0
    %301 = vmatpush1.msra.mxu0 0.0
    %302 = vmatprep.subr.mxu0 0.0
    %303 = vmatpush1.msra.mxu0 0.0
    %304 = vmatprep.subr.mxu0 0.0
    %305 = vmatpush1.msra.mxu0 0.0
    %306 = vmatprep.subr.mxu0 0.0
    %307 = vmatpush1.msra.mxu0 0.0
    %308 = vmatprep.subr.mxu0 0.0
    %309 = vmatpush1.msra.mxu0 0.0
    %310 = vmatprep.subr.mxu0 0.0
    %311 = vmatpush1.msra.mxu0 0.0
    %312 = vmatprep.subr.mxu0 0.0
    %313 = vmatpush1.msra.mxu0 0.0
    %314 = vmatprep.subr.mxu0 0.0
    %315 = vmatpush1.msra.mxu0 0.0
    %316 = vmatprep.subr.mxu0 0.0
    %317 = vmatpush1.msra.mxu0 0.0
    %318 = vmatprep.subr.mxu0 0.0
    %319 = vmatpush1.msra.mxu0 0.0
    %320 = vmatprep.subr.mxu0 0.0
    %321 = vmatpush1.msra.mxu0 0.0
    %322 = vmatprep.subr.mxu0 0.0
    %323 = vmatpush1.msra.mxu0 0.0
    %324 = vmatprep.subr.mxu0 0.0
    %325 = vmatpush1.msra.mxu0 0.0
    %326 = vmatprep.subr.mxu0 0.0
    %327 = vmatpush1.msra.mxu0 0.0
    %328 = vmatprep.subr.mxu0 0.0
    %329 = vmatpush1.msra.mxu0 0.0
    %330 = vmatprep.subr.mxu0 0.0
    %331 = vmatpush1.msra.mxu0 0.0
    %332 = vmatprep.mubr.f32.mxu0 0.0
    %333 = vmatmul.mubr.f32.gmra.mrb[0].mxu0 %v266
    %v334 = vpop.f32.mrb[0].mxu0
    %v335 = vadd.f32 %v263, %v334
    %v336 = vpop.f32.mrb[0].mxu0
    %337 = vdwg.mxu0
    %v338 = vld [vmem:[%s7] sm:$0xff]
    %v339 = vld [vmem:[%s7 + $0x8] sm:$0xff]
    %v340 = vld [vmem:[%s7 + $0x10] sm:$0xff]
    %v341 = vld [vmem:[%s7 + $0x18] sm:$0xff]
    %v342 = vld [vmem:[%s8] sm:$0x1]
    %v344 = vlaneseq
    %v345 = vshrl.u32 %v344, 7
    %v346 = vsub.s32 0, %v345
    %v347 = vrot.slane %v342, %v346
    %v350 = vsel %vm178, %v335, 0
    %352 = vmatprep.subr.mxu0 0.0
    %353 = vmatpush1.msra.mxu0 %v338
    %354 = vmatprep.subr.mxu0 0.0
    %355 = vmatpush1.msra.mxu0 %v339
    %356 = vmatprep.subr.mxu0 0.0
    %357 = vmatpush1.msra.mxu0 %v340
    %358 = vmatprep.subr.mxu0 0.0
    %359 = vmatpush1.msra.mxu0 %v341
    %360 = vmatprep.subr.mxu0 0.0
    %361 = vmatpush1.msra.mxu0 0.0
    %362 = vmatprep.subr.mxu0 0.0
    %363 = vmatpush1.msra.mxu0 0.0
    %364 = vmatprep.subr.mxu0 0.0
    %365 = vmatpush1.msra.mxu0 0.0
    %366 = vmatprep.subr.mxu0 0.0
    %367 = vmatpush1.msra.mxu0 0.0
    %368 = vmatprep.subr.mxu0 0.0
    %369 = vmatpush1.msra.mxu0 0.0
    %370 = vmatprep.subr.mxu0 0.0
    %371 = vmatpush1.msra.mxu0 0.0
    %372 = vmatprep.subr.mxu0 0.0
    %373 = vmatpush1.msra.mxu0 0.0
    %374 = vmatprep.subr.mxu0 0.0
    %375 = vmatpush1.msra.mxu0 0.0
    %376 = vmatprep.subr.mxu0 0.0
    %377 = vmatpush1.msra.mxu0 0.0
    %378 = vmatprep.subr.mxu0 0.0
    %379 = vmatpush1.msra.mxu0 0.0
    %380 = vmatprep.subr.mxu0 0.0
    %381 = vmatpush1.msra.mxu0 0.0
    %382 = vmatprep.subr.mxu0 0.0
    %383 = vmatpush1.msra.mxu0 0.0
    %384 = vmatprep.subr.mxu0 0.0
    %385 = vmatpush1.msra.mxu0 0.0
    %386 = vmatprep.subr.mxu0 0.0
    %387 = vmatpush1.msra.mxu0 0.0
    %388 = vmatprep.subr.mxu0 0.0
    %389 = vmatpush1.msra.mxu0 0.0
    %390 = vmatprep.subr.mxu0 0.0
    %391 = vmatpush1.msra.mxu0 0.0
    %392 = vmatprep.subr.mxu0 0.0
    %393 = vmatpush1.msra.mxu0 0.0
    %394 = vmatprep.subr.mxu0 0.0
    %395 = vmatpush1.msra.mxu0 0.0
    %396 = vmatprep.subr.mxu0 0.0
    %397 = vmatpush1.msra.mxu0 0.0
    %398 = vmatprep.subr.mxu0 0.0
    %399 = vmatpush1.msra.mxu0 0.0
    %400 = vmatprep.subr.mxu0 0.0
    %401 = vmatpush1.msra.mxu0 0.0
    %402 = vmatprep.subr.mxu0 0.0
    %403 = vmatpush1.msra.mxu0 0.0
    %404 = vmatprep.subr.mxu0 0.0
    %405 = vmatpush1.msra.mxu0 0.0
    %406 = vmatprep.subr.mxu0 0.0
    %407 = vmatpush1.msra.mxu0 0.0
    %408 = vmatprep.subr.mxu0 0.0
    %409 = vmatpush1.msra.mxu0 0.0
    %410 = vmatprep.subr.mxu0 0.0
    %411 = vmatpush1.msra.mxu0 0.0
    %412 = vmatprep.subr.mxu0 0.0
    %413 = vmatpush1.msra.mxu0 0.0
    %414 = vmatprep.subr.mxu0 0.0
    %415 = vmatpush1.msra.mxu0 0.0
    %416 = vmatprep.mubr.f32.mxu0 0.0
    %417 = vmatmul.mubr.f32.gmra.mrb[0].mxu0 %v350
    %v418 = vpop.f32.mrb[0].mxu0
    %v419 = vadd.f32 %v347, %v418
    %v420 = vpop.f32.mrb[0].mxu0
    %421 = vdwg.mxu0
    %v422 = vld [vmem:[#allocation7] sm:$0xff]
    %v423 = vld [vmem:[#allocation7 + $0x8] sm:$0xff]
    %v424 = vld [vmem:[#allocation7 + $0x10] sm:$0xff]
    %v425 = vld [vmem:[#allocation7 + $0x18] sm:$0xff]
    %v426 = vld [vmem:[%s10] sm:$0x1]
    %v428 = vlaneseq
    %v429 = vshrl.u32 %v428, 7
    %v430 = vsub.s32 0, %v429
    %v431 = vrot.slane %v426, %v430
    %433 = vmatprep.subr.mxu0 0.0
    %434 = vmatpush1.msra.mxu0 %v422
    %435 = vmatprep.subr.mxu0 0.0
    %436 = vmatpush1.msra.mxu0 %v423
    %437 = vmatprep.subr.mxu0 0.0
    %438 = vmatpush1.msra.mxu0 %v424
    %439 = vmatprep.subr.mxu0 0.0
    %440 = vmatpush1.msra.mxu0 %v425
    %441 = vmatprep.subr.mxu0 0.0
    %442 = vmatpush1.msra.mxu0 0.0
    %443 = vmatprep.subr.mxu0 0.0
    %444 = vmatpush1.msra.mxu0 0.0
    %445 = vmatprep.subr.mxu0 0.0
    %446 = vmatpush1.msra.mxu0 0.0
    %447 = vmatprep.subr.mxu0 0.0
    %448 = vmatpush1.msra.mxu0 0.0
    %449 = vmatprep.subr.mxu0 0.0
    %450 = vmatpush1.msra.mxu0 0.0
    %451 = vmatprep.subr.mxu0 0.0
    %452 = vmatpush1.msra.mxu0 0.0
    %453 = vmatprep.subr.mxu0 0.0
    %454 = vmatpush1.msra.mxu0 0.0
    %455 = vmatprep.subr.mxu0 0.0
    %456 = vmatpush1.msra.mxu0 0.0
    %457 = vmatprep.subr.mxu0 0.0
    %458 = vmatpush1.msra.mxu0 0.0
    %459 = vmatprep.subr.mxu0 0.0
    %460 = vmatpush1.msra.mxu0 0.0
    %461 = vmatprep.subr.mxu0 0.0
    %462 = vmatpush1.msra.mxu0 0.0
    %463 = vmatprep.subr.mxu0 0.0
    %464 = vmatpush1.msra.mxu0 0.0
    %465 = vmatprep.subr.mxu0 0.0
    %466 = vmatpush1.msra.mxu0 0.0
    %467 = vmatprep.subr.mxu0 0.0
    %468 = vmatpush1.msra.mxu0 0.0
    %469 = vmatprep.subr.mxu0 0.0
    %470 = vmatpush1.msra.mxu0 0.0
    %471 = vmatprep.subr.mxu0 0.0
    %472 = vmatpush1.msra.mxu0 0.0
    %473 = vmatprep.subr.mxu0 0.0
    %474 = vmatpush1.msra.mxu0 0.0
    %475 = vmatprep.subr.mxu0 0.0
    %476 = vmatpush1.msra.mxu0 0.0
    %477 = vmatprep.subr.mxu0 0.0
    %478 = vmatpush1.msra.mxu0 0.0
    %479 = vmatprep.subr.mxu0 0.0
    %480 = vmatpush1.msra.mxu0 0.0
    %481 = vmatprep.subr.mxu0 0.0
    %482 = vmatpush1.msra.mxu0 0.0
    %483 = vmatprep.subr.mxu0 0.0
    %484 = vmatpush1.msra.mxu0 0.0
    %485 = vmatprep.subr.mxu0 0.0
    %486 = vmatpush1.msra.mxu0 0.0
    %487 = vmatprep.subr.mxu0 0.0
    %488 = vmatpush1.msra.mxu0 0.0
    %489 = vmatprep.subr.mxu0 0.0
    %490 = vmatpush1.msra.mxu0 0.0
    %491 = vmatprep.subr.mxu0 0.0
    %492 = vmatpush1.msra.mxu0 0.0
    %493 = vmatprep.subr.mxu0 0.0
    %494 = vmatpush1.msra.mxu0 0.0
    %495 = vmatprep.subr.mxu0 0.0
    %496 = vmatpush1.msra.mxu0 0.0
    %497 = vmatprep.mubr.f32.mxu0 0.0
    %498 = vmatmul.mubr.f32.gmra.mrb[0].mxu0 %v350
    %v499 = vpop.f32.mrb[0].mxu0
    %v500 = vadd.f32 %v431, %v499
    %v501 = vpop.f32.mrb[0].mxu0
    %502 = vdwg.mxu0
    %v503 = vmul.f32 %v419, %v500
    %v504 = vld [vmem:[%s11] sm:$0xff]
    %v505 = vld [vmem:[%s11 + $0x8] sm:$0xff]
    %v506 = vld [vmem:[%s11 + $0x10] sm:$0xff]
    %v507 = vld [vmem:[%s11 + $0x18] sm:$0xff]
    %v508 = vld [vmem:[%s11 + $0x20] sm:$0xff]
    %v509 = vld [vmem:[%s11 + $0x28] sm:$0xff]
    %v510 = vld [vmem:[%s11 + $0x30] sm:$0xff]
    %v511 = vld [vmem:[%s11 + $0x38] sm:$0xff]
    %vm512 = vcmask 523264
    %v514 = vsel %vm512, %v503, 0
    %516 = vmatprep.subr.mxu0 0.0
    %517 = vmatpush1.msra.mxu0 %v504
    %518 = vmatprep.subr.mxu0 0.0
    %519 = vmatpush1.msra.mxu0 %v505
    %520 = vmatprep.subr.mxu0 0.0
    %521 = vmatpush1.msra.mxu0 %v506
    %522 = vmatprep.subr.mxu0 0.0
    %523 = vmatpush1.msra.mxu0 %v507
    %524 = vmatprep.subr.mxu0 0.0
    %525 = vmatpush1.msra.mxu0 %v508
    %526 = vmatprep.subr.mxu0 0.0
    %527 = vmatpush1.msra.mxu0 %v509
    %528 = vmatprep.subr.mxu0 0.0
    %529 = vmatpush1.msra.mxu0 %v510
    %530 = vmatprep.subr.mxu0 0.0
    %531 = vmatpush1.msra.mxu0 %v511
    %532 = vmatprep.subr.mxu0 0.0
    %533 = vmatpush1.msra.mxu0 0.0
    %534 = vmatprep.subr.mxu0 0.0
    %535 = vmatpush1.msra.mxu0 0.0
    %536 = vmatprep.subr.mxu0 0.0
    %537 = vmatpush1.msra.mxu0 0.0
    %538 = vmatprep.subr.mxu0 0.0
    %539 = vmatpush1.msra.mxu0 0.0
    %540 = vmatprep.subr.mxu0 0.0
    %541 = vmatpush1.msra.mxu0 0.0
    %542 = vmatprep.subr.mxu0 0.0
    %543 = vmatpush1.msra.mxu0 0.0
    %544 = vmatprep.subr.mxu0 0.0
    %545 = vmatpush1.msra.mxu0 0.0
    %546 = vmatprep.subr.mxu0 0.0
    %547 = vmatpush1.msra.mxu0 0.0
    %548 = vmatprep.subr.mxu0 0.0
    %549 = vmatpush1.msra.mxu0 0.0
    %550 = vmatprep.subr.mxu0 0.0
    %551 = vmatpush1.msra.mxu0 0.0
    %552 = vmatprep.subr.mxu0 0.0
    %553 = vmatpush1.msra.mxu0 0.0
    %554 = vmatprep.subr.mxu0 0.0
    %555 = vmatpush1.msra.mxu0 0.0
    %556 = vmatprep.subr.mxu0 0.0
    %557 = vmatpush1.msra.mxu0 0.0
    %558 = vmatprep.subr.mxu0 0.0
    %559 = vmatpush1.msra.mxu0 0.0
    %560 = vmatprep.subr.mxu0 0.0
    %561 = vmatpush1.msra.mxu0 0.0
    %562 = vmatprep.subr.mxu0 0.0
    %563 = vmatpush1.msra.mxu0 0.0
    %564 = vmatprep.subr.mxu0 0.0
    %565 = vmatpush1.msra.mxu0 0.0
    %566 = vmatprep.subr.mxu0 0.0
    %567 = vmatpush1.msra.mxu0 0.0
    %568 = vmatprep.subr.mxu0 0.0
    %569 = vmatpush1.msra.mxu0 0.0
    %570 = vmatprep.subr.mxu0 0.0
    %571 = vmatpush1.msra.mxu0 0.0
    %572 = vmatprep.subr.mxu0 0.0
    %573 = vmatpush1.msra.mxu0 0.0
    %574 = vmatprep.subr.mxu0 0.0
    %575 = vmatpush1.msra.mxu0 0.0
    %576 = vmatprep.subr.mxu0 0.0
    %577 = vmatpush1.msra.mxu0 0.0
    %578 = vmatprep.subr.mxu0 0.0
    %579 = vmatpush1.msra.mxu0 0.0
    %580 = vmatprep.mubr.f32.mxu0 0.0
    %581 = vmatmul.mubr.f32.gmra.mrb[0].mxu0 %v514
    %v582 = vpop.f32.mrb[0].mxu0
    %v583 = vadd.f32 0.0, %v582
    %v584 = vpop.f32.mrb[0].mxu0
    %585 = vdwg.mxu0
    %vm586 = vcmask 130048
    %587 = vst.msk [vmem:[#allocation8] sm:$0xff] %vm586, %v583
    // Predicated region
    $region62: #{tpu_custom_call.1} parent=1 // pred_check
      _
    $region63: #{tpu_custom_call.1} parent=1 // pred_check_branch
      %589 = sbr.rel (0) target = $region65
    $region64: #{tpu_custom_call.1} parent=1 // pred_region
      %s591 = ssub.s32 128, 128
      %592 = vsyncadd [#allocation4], %s591
      %s594 = sshll.u32 [#allocation8], 4
      %s595 = int_to_ptr.vmem [resolvable:$true] %s594
      %597 = dma.vmem_to_hbm [thread:$0]  %s595, 128, %s12, [#allocation4]
    $region65: #{tpu_custom_call.1} parent=1 // pred_fallthru
      _
    // Predicated region
    $region66: #{tpu_custom_call.1} parent=1 // pred_check
      _
    $region67: #{tpu_custom_call.1} parent=1 // pred_check_branch
      %599 = sbr.rel (0) target = $region69
    $region68: #{tpu_custom_call.1} parent=1 // pred_region
      %600 = dma.done [#allocation4], 128
    $region69: #{tpu_custom_call.1} parent=1 // pred_fallthru
      _
    %601 = vsyncpa [#allocation3], 1
    %602 = vsyncpa [#allocation6], 1
    %603 = vsyncpa [#allocation4], 1

</llo_original>
